<compile_context>
chip_gen: v7x
topology: tpu7x:2x2x1
jax: 0.10.0
libtpu: 0.0.40
codegen_flags: <defaults>
</compile_context>

<pallas_src>
import math

import jax
import jax.numpy as jnp
from jax.experimental import pallas as pl
from jax.experimental.pallas import tpu as pltpu


def _pgen_kernel(x_ref, w_ref, o_ref):
    # x_ref: [TILE_B, F_pad] (input dtype), w_ref: [1, F_pad] f32.
    x = x_ref[...].astype(jnp.float32)
    w = w_ref[...]
    s = jnp.sum(x * w, axis=-1, keepdims=True)  # VPU mul + single XLU reduce
    o_ref[...] = jax.nn.sigmoid(s)


def _round_up(n, m):
    return ((n + m - 1) // m) * m


def generation_probability(h_attention, decoder_hs, inp, w_attn, w_hs, w_inp,
                           bias, *, tile_b=1024):
    """Pallas wrapper.

    Args:
      h_attention: [B, 1, A]
      decoder_hs:  [B, 1, H]
      inp:         [B, 1, E]
      w_attn: [A], w_hs: [H], w_inp: [E], bias: [1] (or scalar)
      tile_b: rows per grid step (sweep 512-2048 for large B; sized well
              under v7x's 32 MiB scoped-VMEM default).
    Returns:
      [B, 1] generation probability (matches torch .squeeze(1) of [B,1,1]).
    """
    B, _, A = h_attention.shape
    H = decoder_hs.shape[-1]
    E = inp.shape[-1]

    F = A + H + E + 1                       # +1 lane carries the bias
    F_pad = _round_up(F, 128)

    in_dtype = jnp.result_type(h_attention.dtype, decoder_hs.dtype, inp.dtype)

    # One lane-dense input slab: [features | 1 | zero-pad].
    x = jnp.concatenate(
        [
            h_attention.reshape(B, A).astype(in_dtype),
            decoder_hs.reshape(B, H).astype(in_dtype),
            inp.reshape(B, E).astype(in_dtype),
            jnp.ones((B, 1), in_dtype),     # bias column
        ],
        axis=-1,
    )
    if F_pad > F:
        x = jnp.pad(x, ((0, 0), (0, F_pad - F)))

    # One f32 weight row: [wa | wh | wi | bias | zero-pad].
    w = jnp.concatenate(
        [
            w_attn.reshape(A).astype(jnp.float32),
            w_hs.reshape(H).astype(jnp.float32),
            w_inp.reshape(E).astype(jnp.float32),
            jnp.reshape(bias, (1,)).astype(jnp.float32),
        ]
    )
    if F_pad > F:
        w = jnp.pad(w, (0, F_pad - F))
    w = w.reshape(1, F_pad)

    # Tile rows: multiple of 8 sublanes, no bigger than needed for small B.
    tb = min(tile_b, _round_up(B, 8))
    tb = max(8, _round_up(tb, 8))
    B_pad = _round_up(B, tb)
    if B_pad > B:
        x = jnp.pad(x, ((0, B_pad - B), (0, 0)))

    out = pl.pallas_call(
        _pgen_kernel,
        out_shape=jax.ShapeDtypeStruct((B_pad, 1), jnp.float32),
        grid=(B_pad // tb,),
        in_specs=[
            pl.BlockSpec((tb, F_pad), lambda i: (i, 0)),
            pl.BlockSpec((1, F_pad), lambda i: (0, 0)),   # weights stay resident
        ],
        out_specs=pl.BlockSpec((tb, 1), lambda i: (i, 0)),
        compiler_params=pltpu.CompilerParams(
            dimension_semantics=("parallel",)),
    )(x, w)
    return out[:B]


def _reference(h_attention, decoder_hs, inp, w_attn, w_hs, w_inp, bias):
    p = (
        jnp.einsum("bta,a->bt", h_attention, w_attn)
        + jnp.einsum("bth,h->bt", decoder_hs, w_hs)
        + jnp.einsum("bte,e->bt", inp, w_inp)
        + bias
    )
    return jax.nn.sigmoid(p)  # [B, 1]


if __name__ == "__main__":
    # Small shapes consistent with the module's forward.
    B = 2
    embedding_size = 16
    hidden_size = 32
    attention_size = 32

    key = jax.random.PRNGKey(0)
    keys = jax.random.split(key, 7)

    # Deterministic parameter init (shapes from __init__):
    #   W_attention: Linear(attention_size -> 1, no bias)  -> weight [attention_size]
    #   W_hs:        Linear(hidden_size -> 1, no bias)     -> weight [hidden_size]
    #   W_inp:       Linear(embedding_size -> 1, no bias)  -> weight [embedding_size]
    #   bias:        Parameter of shape [1], uniform(-1/sqrt(100), 1/sqrt(100))
    stdev = 1.0 / math.sqrt(100.0)
    w_attn = jax.random.uniform(
        keys[0], (attention_size,), minval=-1 / math.sqrt(attention_size),
        maxval=1 / math.sqrt(attention_size), dtype=jnp.float32)
    w_hs = jax.random.uniform(
        keys[1], (hidden_size,), minval=-1 / math.sqrt(hidden_size),
        maxval=1 / math.sqrt(hidden_size), dtype=jnp.float32)
    w_inp = jax.random.uniform(
        keys[2], (embedding_size,), minval=-1 / math.sqrt(embedding_size),
        maxval=1 / math.sqrt(embedding_size), dtype=jnp.float32)
    bias = jax.random.uniform(
        keys[3], (1,), minval=-stdev, maxval=stdev, dtype=jnp.float32)

    # Example inputs (module-sized).
    h_attention = jax.random.normal(keys[4], (B, 1, attention_size), jnp.float32)
    decoder_hs = jax.random.normal(keys[5], (B, 1, hidden_size), jnp.float32)
    inp = jax.random.normal(keys[6], (B, 1, embedding_size), jnp.float32)

    out = generation_probability(
        h_attention, decoder_hs, inp, w_attn, w_hs, w_inp, bias)
    out = jax.block_until_ready(out)
    ref = _reference(h_attention, decoder_hs, inp, w_attn, w_hs, w_inp, bias)
    assert out.shape == (B, 1), out.shape
    assert jnp.allclose(out, ref, atol=1e-5, rtol=1e-5), (out, ref)

    # Exercise the gridded / padded path (multiple B-tiles, non-multiple B).
    B2 = 200
    k2 = jax.random.split(keys[6], 3)
    h2 = jax.random.normal(k2[0], (B2, 1, attention_size), jnp.float32)
    d2 = jax.random.normal(k2[1], (B2, 1, hidden_size), jnp.float32)
    i2 = jax.random.normal(k2[2], (B2, 1, embedding_size), jnp.float32)
    out2 = generation_probability(
        h2, d2, i2, w_attn, w_hs, w_inp, bias, tile_b=64)
    out2 = jax.block_until_ready(out2)
    ref2 = _reference(h2, d2, i2, w_attn, w_hs, w_inp, bias)
    assert out2.shape == (B2, 1), out2.shape
    assert jnp.allclose(out2, ref2, atol=1e-5, rtol=1e-5)

    print("KERNEL_OK")
</pallas_src>

<mosaic_0001>
module attributes {stable_mosaic.version = 11 : i64} {
  func.func @_pgen_kernel(%arg0: i32, %arg1: memref<8x128xf32, #tpu.memory_space<vmem>>, %arg2: memref<1x128xf32, #tpu.memory_space<vmem>>, %arg3: memref<8x1xf32, #tpu.memory_space<vmem>>) attributes {dimension_semantics = [#tpu.dimension_semantics<parallel>], iteration_bounds = array<i64: 1>, scalar_prefetch = 0 : i64, scratch_operands = 0 : i64, tpu.core_type = #tpu.core_type<tc>, window_params = [{transform_indices = @transform_0, window_bounds = array<i64: 8, 128>}, {pipeline_mode = #tpu.pipeline_mode<synchronous>, transform_indices = @transform_1, window_bounds = array<i64: 1, 128>}, {transform_indices = @transform_2, window_bounds = array<i64: 8, 1>}]} {
    %c0 = arith.constant 0 : index
    %c0_0 = arith.constant 0 : index
    %0 = vector.load %arg1[%c0, %c0_0] : memref<8x128xf32, #tpu.memory_space<vmem>>, vector<8x128xf32>
    %c0_1 = arith.constant 0 : index
    %c0_2 = arith.constant 0 : index
    %1 = vector.load %arg2[%c0_1, %c0_2] : memref<1x128xf32, #tpu.memory_space<vmem>>, vector<1x128xf32>
    %2 = vector.broadcast %1 : vector<1x128xf32> to vector<8x128xf32>
    %3 = arith.mulf %0, %2 : vector<8x128xf32>
    %cst = arith.constant dense<0.000000e+00> : vector<8xf32>
    %4 = vector.multi_reduction <add>, %3, %cst [1] : vector<8x128xf32> to vector<8xf32>
    %5 = vector.shape_cast %4 : vector<8xf32> to vector<8x1xf32>
    %6 = arith.negf %5 : vector<8x1xf32>
    %7 = math.exp %6 : vector<8x1xf32>
    %cst_3 = arith.constant 1.000000e+00 : f32
    %8 = vector.broadcast %cst_3 : f32 to vector<8x1xf32>
    %9 = arith.addf %8, %7 : vector<8x1xf32>
    %10 = arith.divf %8, %9 : vector<8x1xf32>
    %c0_4 = arith.constant 0 : index
    %c0_5 = arith.constant 0 : index
    %11 = vector.load %arg3[%c0_4, %c0_5] : memref<8x1xf32, #tpu.memory_space<vmem>>, vector<8x1xf32>
    tpu.vector_store %arg3[%c0_4, %c0_5], %10 {strides = array<i32>} : memref<8x1xf32, #tpu.memory_space<vmem>>, vector<8x1xf32>,
    return
  }
  func.func @transform_0(%arg0: i32) -> (i32, i32) {
    %c0_i32 = arith.constant 0 : i32
    %c0_i32_0 = arith.constant 0 : i32
    return %arg0, %c0_i32 : i32, i32
  }
  func.func @transform_1(%arg0: i32) -> (i32, i32) {
    %c0_i32 = arith.constant 0 : i32
    %c0_i32_0 = arith.constant 0 : i32
    %c0_i32_1 = arith.constant 0 : i32
    return %c0_i32, %c0_i32_0 : i32, i32
  }
  func.func @transform_2(%arg0: i32) -> (i32, i32) {
    %c0_i32 = arith.constant 0 : i32
    %c0_i32_0 = arith.constant 0 : i32
    return %arg0, %c0_i32 : i32, i32
  }
}

</mosaic_0001>

<llo_original>
// kernel: tpu_custom_call.1
$region0: #{tpu_custom_call.1}
  #allocation0 [shape = 'u32[]', space=smem, size = 0x4, offset = 0x4, fixed_abs, tag = 'smem constant byte address 0x4 - core index']
  #allocation1 [shape = 'u32[144,128]{1,0:T(1,128)}', space=vmem, size = 0x12000, scoped, tag = 'internal scratch']
  %s0 = inlined_call_operand.hbm [shape: f32[8,128], index: 0, kind: input, shape index: {}]
  %s1 = inlined_call_operand.vmem [shape: f32[1,128], index: 1, kind: input, shape index: {}]
  %s2 = inlined_call_operand.vmem [shape: f32[8,1], index: 2, kind: output, shape index: {}]
  %s3 = sld [smem:[#allocation0]]
  $region22: #{tpu_custom_call.1} parent=0
    _
  %s5 = ssub.s32 1, %s3
  %s6 = scalar_select 0, %s5, %s3
  $region1: #{tpu_custom_call.1} parent=0
    #allocation2 [shape = 'u8[4096]{0}', space=vmem, size = 0x1000, scoped, tag = 'input window, operand 0, single buffered']
    #allocation3 [shape = 's32[1]{0}', space=sflag, size = 0x4, scoped, tag = 'scoped memory for tpu_custom_call.1']
    %7 = vsyncpa [#allocation3], 0
    // Predicated region
    $region2: #{tpu_custom_call.1} parent=1 // pred_check
      _
    $region3: #{tpu_custom_call.1} parent=1 // pred_check_branch
      %9 = sbr.rel (0) target = $region5
    $region4: #{tpu_custom_call.1} parent=1 // pred_region
      %s11 = ssub.s32 128, 128
      %12 = vsyncadd [#allocation3], %s11
      %s14 = sshll.u32 [#allocation2], 4
      %s15 = int_to_ptr.vmem [resolvable:$true] %s14
      %17 = dma.hbm_to_vmem [thread:$0]  %s0, 128, %s15, [#allocation3]
    $region5: #{tpu_custom_call.1} parent=1 // pred_fallthru
      _
    // Predicated region
    $region6: #{tpu_custom_call.1} parent=1 // pred_check
      _
    $region7: #{tpu_custom_call.1} parent=1 // pred_check_branch
      %19 = sbr.rel (0) target = $region9
    $region8: #{tpu_custom_call.1} parent=1 // pred_region
      _
    $region9: #{tpu_custom_call.1} parent=1 // pred_fallthru
      _
    // Predicated region
    $region10: #{tpu_custom_call.1} parent=1 // pred_check
      _
    $region11: #{tpu_custom_call.1} parent=1 // pred_check_branch
      %21 = sbr.rel (0) target = $region13
    $region12: #{tpu_custom_call.1} parent=1 // pred_region
      %22 = dma.done [#allocation3], 128
    $region13: #{tpu_custom_call.1} parent=1 // pred_fallthru
      _
    %v23 = vld [vmem:[#allocation2] sm:$0xff]
    %v24 = vld [vmem:[%s1] sm:$0x1]
    %v26 = vlaneseq
    %v27 = vshrl.u32 %v26, 7
    %v28 = vsub.s32 0, %v27
    %v29 = vrot.slane %v24, %v28
    %v31 = vmul.f32 %v23, %v29
    %32 = vadd.xlane.f32.xlu0 %v31
    %v33 = vpop.xlane.xlu0 %32
    %v34 = vxor.u32 %v33, 2147483648
    %v35 = vmul.f32 %v34, 1.442695
    %v36 = vpow.pop %v35
    %v37 = vadd.f32 %v36, 1.0
    %v38 = vrcp.pop %v37
    %v39 = vmul.f32 1.0, %v38
    %vm40 = vcmask 7168
    %41 = vst.msk [vmem:[%s2] sm:$0xff] %vm40, %v39
    // Predicated region
    $region14: #{tpu_custom_call.1} parent=1 // pred_check
      _
    $region15: #{tpu_custom_call.1} parent=1 // pred_check_branch
      %43 = sbr.rel (0) target = $region17
    $region16: #{tpu_custom_call.1} parent=1 // pred_region
      _
    $region17: #{tpu_custom_call.1} parent=1 // pred_fallthru
      _
    // Predicated region
    $region18: #{tpu_custom_call.1} parent=1 // pred_check
      _
    $region19: #{tpu_custom_call.1} parent=1 // pred_check_branch
      %45 = sbr.rel (0) target = $region21
    $region20: #{tpu_custom_call.1} parent=1 // pred_region
      _
    $region21: #{tpu_custom_call.1} parent=1 // pred_fallthru
      _
    %46 = vsyncpa [#allocation3], 1

</llo_original>
